<compile_context>
chip_gen: v6e
topology: v6e:2x2x1
jax: 0.10.0
libtpu: 0.0.40
codegen_flags: <defaults>
</compile_context>

<pallas_src>
import functools

import jax
import jax.numpy as jnp
from jax.experimental import pallas as pl
from jax.experimental.pallas import tpu as pltpu


def _cdiv(a, b):
    return -(-a // b)


def _round_up(a, m):
    return _cdiv(a, m) * m


def _write_counts(out_ref, pred, gt):
    """Sum bool maps into FP/FN/TP and write a lane-dense (8,128) tile."""
    tp = jnp.sum(jnp.logical_and(pred, gt).astype(jnp.int32))
    fp = jnp.sum(pred.astype(jnp.int32)) - tp
    fn = jnp.sum(gt.astype(jnp.int32)) - tp
    # sublane 0 = FP, 1 = FN, 2 = TP (replicated across lanes), rest zero.
    sub = jax.lax.broadcasted_iota(jnp.int32, (8, 128), 0)
    tile = jnp.where(sub == 0, fp,
                     jnp.where(sub == 1, fn,
                               jnp.where(sub == 2, tp, jnp.int32(0))))
    out_ref[...] = tile[None, None, :, :]


def _counts_rows_kernel(x_ref, y_ref, out_ref, *, n_rows, need_mask):
    """Aligned path: x_ref (C, TR, 128), y_ref (TR, 128), out_ref (1,1,8,128)."""
    i = pl.program_id(1)
    C, TR, _ = x_ref.shape

    gt = y_ref[...] != 0                               # (TR, 128) bool
    if C == 1:
        pred = jnp.zeros(gt.shape, dtype=jnp.bool_)    # argmax is always 0
    else:
        x0 = x_ref[0]                                  # (TR, 128)
        m = x_ref[1]
        for c in range(2, C):                          # C-1 plain VPU maxes
            m = jnp.maximum(m, x_ref[c])
        # argmax != 0  <=>  some channel c>0 strictly beats channel 0
        # (ties lose to channel 0, matching torch.argmax first-occurrence).
        pred = m > x0

    if need_mask:
        row = jax.lax.broadcasted_iota(jnp.int32, gt.shape, 0)
        valid = (i * TR + row) < n_rows                # mask overhanging rows
        pred = jnp.logical_and(pred, valid)
        gt = jnp.logical_and(gt, valid)

    _write_counts(out_ref, pred, gt)


def _counts_flat_kernel(x_ref, y_ref, out_ref, *, n_cols, need_mask):
    """Ragged path: x_ref (C, TN), y_ref (1, TN), out_ref (1,1,8,128)."""
    i = pl.program_id(1)
    C, TN = x_ref.shape

    gt = y_ref[...] != 0                               # (1, TN) bool
    if C == 1:
        pred = jnp.zeros(gt.shape, dtype=jnp.bool_)
    else:
        xv = x_ref[...]                                # (C, TN)
        # max over all channels > channel 0  <=>  argmax != 0 (ties -> ch 0).
        pred = jnp.max(xv, axis=0, keepdims=True) > xv[0:1, :]

    if need_mask:
        lane = jax.lax.broadcasted_iota(jnp.int32, gt.shape, 1)
        valid = (i * TN + lane) < n_cols               # mask overhanging lanes
        pred = jnp.logical_and(pred, valid)
        gt = jnp.logical_and(gt, valid)

    _write_counts(out_ref, pred, gt)


def _vmem_plan():
    """(vmem_limit_bytes, per-block x-byte budget), sized from the chip."""
    vmem_cap = 64 * 1024 * 1024
    try:
        vmem_cap = int(getattr(pltpu.get_tpu_info(), "vmem_capacity_bytes",
                               vmem_cap))
    except Exception:
        pass
    vmem_limit = min((3 * vmem_cap) // 4, 96 * 1024 * 1024)
    budget = min(vmem_limit // 6, 12 * 1024 * 1024)
    return int(vmem_limit), int(budget)


def _plan_rows(R, C, itemsize, budget, min_tiles):
    """Rows-per-block (multiple of 8 or == R), bytes-budgeted."""
    cap = max(8, (max(1, budget // (C * 128 * itemsize)) // 8) * 8)
    if min_tiles > 1:
        cap = min(cap, max(8, _round_up(_cdiv(R, min_tiles), 8)))
    if cap >= R:
        return R, 1
    return cap, _cdiv(R, cap)


def _plan_cols(hw, C, itemsize, budget, min_tiles):
    """Lanes-per-block (multiple of 128 or == hw), bytes-budgeted."""
    cap = max(128, (max(1, budget // (C * itemsize)) // 128) * 128)
    if min_tiles > 1:
        cap = min(cap, max(128, _round_up(_cdiv(hw, min_tiles), 128)))
    if cap >= hw:
        return hw, 1
    return cap, _cdiv(hw, cap)


def activity_loss(x, y):
    """x: (B, C, H, W) float logits, y: (B, H, W) int labels -> scalar loss."""
    B, C, H, W = x.shape
    hw = H * W
    itemsize = x.dtype.itemsize

    vmem_limit, budget = _vmem_plan()
    # v7x megacore: give both TensorCores work even for batch-1 inputs.
    min_tiles = 4 if B == 1 else 1

    if hw % 128 == 0:
        # Preferred layout: spatial axis split into (R, 128) -> fully dense
        # vregs, channel axis leading (non-vreg). Free reshape, no copy.
        R = hw // 128
        TR, num_tiles = _plan_rows(R, C, itemsize, budget, min_tiles)
        need_mask = (TR * num_tiles) != R
        kernel = functools.partial(_counts_rows_kernel, n_rows=R,
                                   need_mask=need_mask)
        inputs = (x.reshape(B, C, R, 128), y.reshape(B, R, 128))
        in_specs = [
            pl.BlockSpec((None, C, TR, 128), lambda b, i: (b, 0, i, 0)),
            pl.BlockSpec((None, TR, 128), lambda b, i: (b, i, 0)),
        ]
    else:
        # Ragged spatial size: flat layout, no padding — the last block
        # overhangs hw and is masked inside the kernel.
        TN, num_tiles = _plan_cols(hw, C, itemsize, budget, min_tiles)
        need_mask = (TN * num_tiles) != hw
        kernel = functools.partial(_counts_flat_kernel, n_cols=hw,
                                   need_mask=need_mask)
        inputs = (x.reshape(B, C, hw), y.reshape(B, 1, hw))
        in_specs = [
            pl.BlockSpec((None, C, TN), lambda b, i: (b, 0, i)),
            pl.BlockSpec((None, 1, TN), lambda b, i: (b, 0, i)),
        ]

    out_bytes = B * num_tiles * 8 * 128 * 4
    cost = pl.CostEstimate(
        flops=int(B * hw * (C + 3)),
        transcendentals=0,
        bytes_accessed=int(x.size * itemsize + y.size * y.dtype.itemsize
                           + out_bytes),
    )

    partials = pl.pallas_call(
        kernel,
        out_shape=jax.ShapeDtypeStruct((B, num_tiles, 8, 128), jnp.int32),
        grid_spec=pltpu.PrefetchScalarGridSpec(
            num_scalar_prefetch=0,
            grid=(B, num_tiles),
            in_specs=in_specs,
            out_specs=pl.BlockSpec((1, 1, 8, 128), lambda b, i: (b, i, 0, 0)),
        ),
        compiler_params=pltpu.CompilerParams(
            dimension_semantics=("parallel", "parallel"),
            vmem_limit_bytes=vmem_limit,
        ),
        cost_estimate=cost,
    )(*inputs)

    # Tiny reduction of the per-block partials (lane 0 of each tile).
    # NOTE: int32 totals overflow only above ~2.1e9 total pixels.
    totals = jnp.sum(partials[:, :, :, 0], axis=(0, 1))     # (8,) int32
    FP = totals[0].astype(jnp.float32)
    FN = totals[1].astype(jnp.float32)
    TP = totals[2].astype(jnp.float32)

    # TODO(synk): empty-case convention of the undefined get_f1 is assumed to
    # be f1 = 0 -> loss = 1; adjust if the reference differs.
    denom = 2.0 * TP + FP + FN
    f1 = jnp.where(denom > 0, 2.0 * TP / jnp.maximum(denom, 1.0), 0.0)
    # TODO(synk): the reference loss is non-differentiable (argmax + counts);
    # this matches the forward value only.
    return 1.0 - f1


if __name__ == "__main__":
    def _ref_loss(x, y):
        pred = jnp.argmax(x, axis=1) != 0
        gt = y != 0
        tp = jnp.sum(pred & gt).astype(jnp.float32)
        fp = jnp.sum(pred & ~gt).astype(jnp.float32)
        fn = jnp.sum(~pred & gt).astype(jnp.float32)
        denom = 2.0 * tp + fp + fn
        f1 = jnp.where(denom > 0, 2.0 * tp / jnp.maximum(denom, 1.0), 0.0)
        return 1.0 - f1

    key = jax.random.PRNGKey(0)
    kx, ky = jax.random.split(key)

    # 1) Aligned path (H*W % 128 == 0), B > 1.
    B, C, H, W = 2, 4, 16, 16
    xa = jax.random.normal(kx, (B, C, H, W), dtype=jnp.float32)
    ya = jax.random.randint(ky, (B, H, W), 0, C, dtype=jnp.int32)
    la = activity_loss(xa, ya)
    jax.block_until_ready(la)
    assert jnp.allclose(la, _ref_loss(xa, ya), atol=1e-6), (la, _ref_loss(xa, ya))

    # 2) Ragged path (H*W % 128 != 0) — no padding, in-kernel lane mask.
    xb = jax.random.normal(kx, (B, C, 10, 10), dtype=jnp.float32)
    yb = jax.random.randint(ky, (B, 10, 10), 0, C, dtype=jnp.int32)
    lb = activity_loss(xb, yb)
    jax.block_until_ready(lb)
    assert jnp.allclose(lb, _ref_loss(xb, yb), atol=1e-6), (lb, _ref_loss(xb, yb))

    # 3) B == 1: forced multi-tile grid (megacore) + row-overhang masking.
    xc = jax.random.normal(kx, (1, 4, 48, 48), dtype=jnp.float32)
    yc = jax.random.randint(ky, (1, 48, 48), 0, 4, dtype=jnp.int32)
    lc = activity_loss(xc, yc)
    jax.block_until_ready(lc)
    assert jnp.allclose(lc, _ref_loss(xc, yc), atol=1e-6), (lc, _ref_loss(xc, yc))

    # 4) B == 1 ragged: lane-overhang masking on the flat path.
    xd = jax.random.normal(kx, (1, 3, 13, 13), dtype=jnp.float32)
    yd = jax.random.randint(ky, (1, 13, 13), 0, 3, dtype=jnp.int32)
    ld = activity_loss(xd, yd)
    jax.block_until_ready(ld)
    assert jnp.allclose(ld, _ref_loss(xd, yd), atol=1e-6), (ld, _ref_loss(xd, yd))

    print("KERNEL_OK")
</pallas_src>

<mosaic_0001>
module attributes {stable_mosaic.version = 11 : i64} {
  func.func @_counts_rows_kernel(%arg0: i32, %arg1: i32, %arg2: memref<1x4x2x128xf32, #tpu.memory_space<vmem>>, %arg3: memref<1x2x128xi32, #tpu.memory_space<vmem>>, %arg4: memref<1x1x8x128xi32, #tpu.memory_space<vmem>>) attributes {dimension_semantics = [#tpu.dimension_semantics<parallel>, #tpu.dimension_semantics<parallel>], iteration_bounds = array<i64: 2, 1>, scalar_prefetch = 0 : i64, scratch_operands = 0 : i64, tpu.core_type = #tpu.core_type<tc>, window_params = [{transform_indices = @transform_0, window_bounds = array<i64: 1, 4, 2, 128>}, {transform_indices = @transform_1, window_bounds = array<i64: 1, 2, 128>}, {transform_indices = @transform_2, window_bounds = array<i64: 1, 1, 8, 128>}]} {
    %c0 = arith.constant 0 : index
    %c0_0 = arith.constant 0 : index
    %c0_1 = arith.constant 0 : index
    %0 = vector.load %arg3[%c0, %c0_0, %c0_1] : memref<1x2x128xi32, #tpu.memory_space<vmem>>, vector<1x2x128xi32>
    %1 = vector.shape_cast %0 : vector<1x2x128xi32> to vector<2x128xi32>
    %c0_i32 = arith.constant 0 : i32
    %2 = vector.broadcast %c0_i32 : i32 to vector<2x128xi32>
    %3 = arith.cmpi ne, %1, %2 : vector<2x128xi32>
    %c0_2 = arith.constant 0 : index
    %c0_3 = arith.constant 0 : index
    %c0_4 = arith.constant 0 : index
    %c0_5 = arith.constant 0 : index
    %4 = vector.load %arg2[%c0_2, %c0_3, %c0_4, %c0_5] : memref<1x4x2x128xf32, #tpu.memory_space<vmem>>, vector<1x1x2x128xf32>
    %5 = vector.shape_cast %4 : vector<1x1x2x128xf32> to vector<2x128xf32>
    %c0_6 = arith.constant 0 : index
    %c1 = arith.constant 1 : index
    %c0_7 = arith.constant 0 : index
    %c0_8 = arith.constant 0 : index
    %6 = vector.load %arg2[%c0_6, %c1, %c0_7, %c0_8] : memref<1x4x2x128xf32, #tpu.memory_space<vmem>>, vector<1x1x2x128xf32>
    %7 = vector.shape_cast %6 : vector<1x1x2x128xf32> to vector<2x128xf32>
    %c0_9 = arith.constant 0 : index
    %c2 = arith.constant 2 : index
    %c0_10 = arith.constant 0 : index
    %c0_11 = arith.constant 0 : index
    %8 = vector.load %arg2[%c0_9, %c2, %c0_10, %c0_11] : memref<1x4x2x128xf32, #tpu.memory_space<vmem>>, vector<1x1x2x128xf32>
    %9 = vector.shape_cast %8 : vector<1x1x2x128xf32> to vector<2x128xf32>
    %10 = arith.maximumf %7, %9 : vector<2x128xf32>
    %c0_12 = arith.constant 0 : index
    %c3 = arith.constant 3 : index
    %c0_13 = arith.constant 0 : index
    %c0_14 = arith.constant 0 : index
    %11 = vector.load %arg2[%c0_12, %c3, %c0_13, %c0_14] : memref<1x4x2x128xf32, #tpu.memory_space<vmem>>, vector<1x1x2x128xf32>
    %12 = vector.shape_cast %11 : vector<1x1x2x128xf32> to vector<2x128xf32>
    %13 = arith.maximumf %10, %12 : vector<2x128xf32>
    %14 = arith.cmpf ogt, %13, %5 : vector<2x128xf32>
    %15 = arith.andi %14, %3 : vector<2x128xi1>
    %16 = arith.extui %15 : vector<2x128xi1> to vector<2x128xi32>
    %17 = vector.shape_cast %16 : vector<2x128xi32> to vector<1x2x128xi32>
    %cst = arith.constant dense<0> : vector<1xi32>
    %18 = vector.multi_reduction <add>, %17, %cst [1, 2] : vector<1x2x128xi32> to vector<1xi32>
    %19 = vector.shape_cast %18 : vector<1xi32> to vector<1x1x1xi32>
    %20 = vector.extract %19[0, 0, 0] : i32 from vector<1x1x1xi32>
    %21 = arith.extui %14 : vector<2x128xi1> to vector<2x128xi32>
    %22 = vector.shape_cast %21 : vector<2x128xi32> to vector<1x2x128xi32>
    %cst_15 = arith.constant dense<0> : vector<1xi32>
    %23 = vector.multi_reduction <add>, %22, %cst_15 [1, 2] : vector<1x2x128xi32> to vector<1xi32>
    %24 = vector.shape_cast %23 : vector<1xi32> to vector<1x1x1xi32>
    %25 = vector.extract %24[0, 0, 0] : i32 from vector<1x1x1xi32>
    %26 = arith.subi %25, %20 : i32
    %27 = arith.extui %3 : vector<2x128xi1> to vector<2x128xi32>
    %28 = vector.shape_cast %27 : vector<2x128xi32> to vector<1x2x128xi32>
    %cst_16 = arith.constant dense<0> : vector<1xi32>
    %29 = vector.multi_reduction <add>, %28, %cst_16 [1, 2] : vector<1x2x128xi32> to vector<1xi32>
    %30 = vector.shape_cast %29 : vector<1xi32> to vector<1x1x1xi32>
    %31 = vector.extract %30[0, 0, 0] : i32 from vector<1x1x1xi32>
    %32 = arith.subi %31, %20 : i32
    %33 = tpu.iota {dimensions = array<i32: 0>} : vector<8x128xi32>
    %c0_i32_17 = arith.constant 0 : i32
    %34 = vector.broadcast %c0_i32_17 : i32 to vector<8x128xi32>
    %35 = arith.cmpi eq, %33, %34 : vector<8x128xi32>
    %c1_i32 = arith.constant 1 : i32
    %36 = vector.broadcast %c1_i32 : i32 to vector<8x128xi32>
    %37 = arith.cmpi eq, %33, %36 : vector<8x128xi32>
    %c2_i32 = arith.constant 2 : i32
    %38 = vector.broadcast %c2_i32 : i32 to vector<8x128xi32>
    %39 = arith.cmpi eq, %33, %38 : vector<8x128xi32>
    %c0_i32_18 = arith.constant 0 : i32
    %40 = vector.broadcast %20 : i32 to vector<8x128xi32>
    %41 = vector.broadcast %c0_i32_18 : i32 to vector<8x128xi32>
    %42 = arith.select %39, %40, %41 : vector<8x128xi1>, vector<8x128xi32>
    %43 = vector.broadcast %32 : i32 to vector<8x128xi32>
    %44 = arith.select %37, %43, %42 : vector<8x128xi1>, vector<8x128xi32>
    %45 = vector.broadcast %26 : i32 to vector<8x128xi32>
    %46 = arith.select %35, %45, %44 : vector<8x128xi1>, vector<8x128xi32>
    %47 = vector.shape_cast %46 : vector<8x128xi32> to vector<1x1x8x128xi32>
    %c0_19 = arith.constant 0 : index
    %c0_20 = arith.constant 0 : index
    %c0_21 = arith.constant 0 : index
    %c0_22 = arith.constant 0 : index
    %48 = vector.load %arg4[%c0_19, %c0_20, %c0_21, %c0_22] : memref<1x1x8x128xi32, #tpu.memory_space<vmem>>, vector<1x1x8x128xi32>
    tpu.vector_store %arg4[%c0_19, %c0_20, %c0_21, %c0_22], %47 {strides = array<i32>} : memref<1x1x8x128xi32, #tpu.memory_space<vmem>>, vector<1x1x8x128xi32>,
    return
  }
  func.func @transform_0(%arg0: i32, %arg1: i32) -> (i32, i32, i32, i32) {
    %c0_i32 = arith.constant 0 : i32
    %c0_i32_0 = arith.constant 0 : i32
    %c0_i32_1 = arith.constant 0 : i32
    return %arg0, %c0_i32, %arg1, %c0_i32_0 : i32, i32, i32, i32
  }
  func.func @transform_1(%arg0: i32, %arg1: i32) -> (i32, i32, i32) {
    %c0_i32 = arith.constant 0 : i32
    %c0_i32_0 = arith.constant 0 : i32
    return %arg0, %arg1, %c0_i32 : i32, i32, i32
  }
  func.func @transform_2(%arg0: i32, %arg1: i32) -> (i32, i32, i32, i32) {
    %c0_i32 = arith.constant 0 : i32
    %c0_i32_0 = arith.constant 0 : i32
    %c0_i32_1 = arith.constant 0 : i32
    return %arg0, %arg1, %c0_i32, %c0_i32_0 : i32, i32, i32, i32
  }
}

</mosaic_0001>

<llo_original>
// kernel: tpu_custom_call.1
$region0: #{tpu_custom_call.1}
  #allocation0 [shape = 'u32[]', space=smem, size = 0x4, offset = 0x4, fixed_abs, tag = 'smem constant byte address 0x4 - core index']
  #allocation1 [shape = 'u32[144,128]{1,0:T(1,128)}', space=vmem, size = 0x12000, scoped, tag = 'internal scratch']
  %s0 = inlined_call_operand.hbm [shape: f32[2,4,2,128], index: 0, kind: input, shape index: {}]
  %s1 = inlined_call_operand.hbm [shape: s32[2,2,128], index: 1, kind: input, shape index: {}]
  %s2 = inlined_call_operand.hbm [shape: s32[2,1,8,128], index: 2, kind: output, shape index: {}]
  %s3 = sld [smem:[#allocation0]]
  $region49: #{tpu_custom_call.1} parent=0
    _
  %s5 = ssub.s32 1, %s3
  %s6 = scalar_select 0, %s5, %s3
  $region1: #{tpu_custom_call.1} parent=0
    #allocation2 [shape = 'u8[8192]{0}', space=vmem, size = 0x2000, scoped, tag = 'input window, operand 0']
    #allocation3 [shape = 's32[2]{0}', space=sflag, size = 0x8, scoped, tag = 'scoped memory for tpu_custom_call.1']
    #allocation4 [shape = 's32[2]{0}', space=sflag, size = 0x8, scoped, tag = 'scoped memory for tpu_custom_call.1']
    #allocation5 [shape = 'u8[2048]{0}', space=vmem, size = 0x800, scoped, tag = 'input window, operand 1']
    #allocation6 [shape = 's32[2]{0}', space=sflag, size = 0x8, scoped, tag = 'scoped memory for tpu_custom_call.1']
    #allocation7 [shape = 'u8[8192]{0}', space=vmem, size = 0x2000, scoped, tag = 'output window, operand 0']
    %7 = vsyncpa [#allocation3], 0
    %s8 = scalar_lea.sflag [#allocation3], 1
    %9 = vsyncpa %s8, 0
    %10 = vsyncpa [#allocation6], 0
    %s11 = scalar_lea.sflag [#allocation6], 1
    %12 = vsyncpa %s11, 0
    %13 = vsyncpa [#allocation4], 0
    %s14 = scalar_lea.sflag [#allocation4], 1
    %15 = vsyncpa %s14, 0
    loop: start=0, step=1, limit=4
    $region2: #{tpu_custom_call.1} parent=1 // loop_pre_header
      _
    $region3: #{tpu_custom_call.1} parent=1 // loop_header
      %s17 = sphi 0, %s21
      %p18 = scmp.ge.s32.totalorder %s17, 4
      %s24 = sphi 0, %s36
      %s25 = sphi 0, %s32
      %s26 = sphi 0, %s24
      %s27 = sphi 0, %s25
      %s28 = sphi 0, %s26
      %s29 = sphi 0, %s27
      %s41 = sphi 0, %s43
      %s44 = sphi 0, %s41
      %s45 = sphi 0, %s44
      %s61 = sphi 0, %s45
      %s69 = sphi 0, %s71
      %s72 = sphi 0, %s69
      %s73 = sphi 0, %s72
      %s89 = sphi 0, %s73
      %s97 = sphi 0, %s99
      %s100 = sphi 0, %s97
      %s101 = sphi 0, %s100
      %s117 = sphi 0, %s101
    $region4: #{tpu_custom_call.1} parent=1 // loop_header_branch
      %20 = sbr.rel (%p18) target = $region8
    $region5: #{tpu_custom_call.1} parent=1 // loop_body
      %s22 = ssub.s32 %s17, 1
      %s23 = ssub.s32 %s17, 2
      %s30 = sadd.s32 1, %s25
      %p31 = scmp.ge.s32.totalorder %s30, 1
      %s32 = scalar_select %p31, 0, %s30
      %s33 = sadd.s32 1, %s24
      %s34 = scalar_select %p31, %s33, %s24
      %p35 = scmp.ge.s32.totalorder %s34, 2
      %s36 = scalar_select %p35, 0, %s34
      %s37 = ssub.s32 %s24, %s36
      %s38 = ssub.s32 %s25, %s32
      %s39 = sor.u32 %s37, %s38
      %p40 = scmp.eq.s32.totalorder %s39, 0
      %s42 = sadd.s32 %s41, 1
      %s43 = scalar_select %p40, %s41, %s42
      %p46 = pneg %p40
      %p47 = scmp.eq.s32.totalorder %s17, 1
      %p48 = por %p46, %p47
      %p49 = scmp.ne.s32.totalorder %s41, %s44
      %p50 = scmp.eq.s32.totalorder %s17, 0
      %p51 = por %p49, %p50
      %p52 = scmp.ne.s32.totalorder %s41, %s44
      %p53 = scmp.eq.s32.totalorder %s22, 1
      %p54 = por %p52, %p53
      %p55 = scmp.ne.s32.totalorder %s44, %s45
      %p56 = scmp.eq.s32.totalorder %s22, 0
      %p57 = por %p55, %p56
      %p58 = scmp.ne.s32.totalorder %s44, %s45
      %p59 = scmp.eq.s32.totalorder %s23, 1
      %p60 = por %p58, %p59
      %p62 = scmp.ne.s32.totalorder %s45, %s61
      %p63 = scmp.eq.s32.totalorder %s23, 0
      %p64 = por %p62, %p63
      %s65 = ssub.s32 %s24, %s36
      %s66 = ssub.s32 %s25, %s32
      %s67 = sor.u32 %s65, %s66
      %p68 = scmp.eq.s32.totalorder %s67, 0
      %s70 = sadd.s32 %s69, 1
      %s71 = scalar_select %p68, %s69, %s70
      %p74 = pneg %p68
      %p75 = scmp.eq.s32.totalorder %s17, 1
      %p76 = por %p74, %p75
      %p77 = scmp.ne.s32.totalorder %s69, %s72
      %p78 = scmp.eq.s32.totalorder %s17, 0
      %p79 = por %p77, %p78
      %p80 = scmp.ne.s32.totalorder %s69, %s72
      %p81 = scmp.eq.s32.totalorder %s22, 1
      %p82 = por %p80, %p81
      %p83 = scmp.ne.s32.totalorder %s72, %s73
      %p84 = scmp.eq.s32.totalorder %s22, 0
      %p85 = por %p83, %p84
      %p86 = scmp.ne.s32.totalorder %s72, %s73
      %p87 = scmp.eq.s32.totalorder %s23, 1
      %p88 = por %p86, %p87
      %p90 = scmp.ne.s32.totalorder %s73, %s89
      %p91 = scmp.eq.s32.totalorder %s23, 0
      %p92 = por %p90, %p91
      %s93 = ssub.s32 %s24, %s36
      %s94 = ssub.s32 %s25, %s32
      %s95 = sor.u32 %s93, %s94
      %p96 = scmp.eq.s32.totalorder %s95, 0
      %s98 = sadd.s32 %s97, 1
      %s99 = scalar_select %p96, %s97, %s98
      %p102 = pneg %p96
      %p103 = scmp.eq.s32.totalorder %s17, 1
      %p104 = por %p102, %p103
      %p105 = scmp.ne.s32.totalorder %s97, %s100
      %p106 = scmp.eq.s32.totalorder %s17, 0
      %p107 = por %p105, %p106
      %p108 = scmp.ne.s32.totalorder %s97, %s100
      %p109 = scmp.eq.s32.totalorder %s22, 1
      %p110 = por %p108, %p109
      %p111 = scmp.ne.s32.totalorder %s100, %s101
      %p112 = scmp.eq.s32.totalorder %s22, 0
      %p113 = por %p111, %p112
      %p114 = scmp.ne.s32.totalorder %s100, %s101
      %p115 = scmp.eq.s32.totalorder %s23, 1
      %p116 = por %p114, %p115
      %p118 = scmp.ne.s32.totalorder %s101, %s117
      %p119 = scmp.eq.s32.totalorder %s23, 0
      %p120 = por %p118, %p119
      %p121 = scmp.le.s32.totalorder 1, %s17
      %p122 = scmp.lt.s32.totalorder %s17, 3
      %p123 = pnand %p121, %p122
      %p124 = pneg %p123
      // Predicated region
      $region9: #{tpu_custom_call.1} parent=5 // pred_check
        _
      $region10: #{tpu_custom_call.1} parent=5 // pred_check_branch
        %126 = sbr.rel (%p123) target = $region12
      $region11: #{tpu_custom_call.1} parent=5 // pred_region
        %s127 = ssub.s32 %s17, 1
      $region12: #{tpu_custom_call.1} parent=5 // pred_fallthru
        _
      %p128 = scmp.lt.s32.totalorder %s17, 2
      // Predicated region
      $region13: #{tpu_custom_call.1} parent=5 // pred_check
        %p129 = pneg %p128
      $region14: #{tpu_custom_call.1} parent=5 // pred_check_branch
        %131 = sbr.rel (%p129) target = $region16
      $region15: #{tpu_custom_call.1} parent=5 // pred_region
        // Predicated region
        $region17: #{tpu_custom_call.1} parent=15 // pred_check
          %p132 = pneg %p51
        $region18: #{tpu_custom_call.1} parent=15 // pred_check_branch
          %134 = sbr.rel (%p132) target = $region20
        $region19: #{tpu_custom_call.1} parent=15 // pred_region
          %s135 = sand.u32 %s41, 1
          %s136 = scalar_lea.sflag [#allocation3], %s135
          %s137 = sand.u32 %s41, 1
          %s138 = smul.addr %s137, 8
          %s139 = scalar_lea.vmem [#allocation2], %s138
          %s141 = ssub.s32 128, 128
          %142 = vsyncadd %s136, %s141
          %s143 = smul.addr %s24, 4
          %s144 = sadd.s32 %s25, %s143
          %s145 = smul.addr %s144, 32
          %s146 = scalar_lea.hbm %s0, %s145
          %s147 = sshll.u32 %s139, 4
          %s148 = int_to_ptr.vmem [resolvable:$true] %s147
          %153 = dma.hbm_to_vmem [thread:$0]  %s146, 128, %s148, %s136, 32, 32, 2
        $region20: #{tpu_custom_call.1} parent=15 // pred_fallthru
          _
        // Predicated region
        $region21: #{tpu_custom_call.1} parent=15 // pred_check
          %p154 = pneg %p79
        $region22: #{tpu_custom_call.1} parent=15 // pred_check_branch
          %156 = sbr.rel (%p154) target = $region24
        $region23: #{tpu_custom_call.1} parent=15 // pred_region
          %s157 = sand.u32 %s69, 1
          %s158 = scalar_lea.sflag [#allocation6], %s157
          %s159 = sand.u32 %s69, 1
          %s160 = smul.addr %s159, 2
          %s161 = scalar_lea.vmem [#allocation5], %s160
          %s163 = ssub.s32 32, 32
          %164 = vsyncadd %s158, %s163
          %s165 = sadd.s32 %s25, %s24
          %s166 = smul.addr %s165, 32
          %s167 = scalar_lea.hbm %s1, %s166
          %s169 = sshll.u32 %s161, 4
          %s170 = int_to_ptr.vmem [resolvable:$true] %s169
          %172 = dma.hbm_to_vmem [thread:$0]  %s167, 32, %s170, %s158
        $region24: #{tpu_custom_call.1} parent=15 // pred_fallthru
          _
      $region16: #{tpu_custom_call.1} parent=5 // pred_fallthru
        _
      %p173 = scmp.le.s32.totalorder 1, %s17
      %p174 = scmp.lt.s32.totalorder %s17, 3
      %p175 = pnand %p173, %p174
      %p176 = pneg %p175
      // Predicated region
      $region25: #{tpu_custom_call.1} parent=5 // pred_check
        _
      $region26: #{tpu_custom_call.1} parent=5 // pred_check_branch
        %178 = sbr.rel (%p175) target = $region28
      $region27: #{tpu_custom_call.1} parent=5 // pred_region
        %s179 = ssub.s32 %s17, 1
        %s180 = sand.u32 %s44, 1
        %s181 = scalar_lea.sflag [#allocation3], %s180
        %s182 = sand.u32 %s44, 1
        %s183 = smul.addr %s182, 8
        %s184 = scalar_lea.vmem [#allocation2], %s183
        // Predicated region
        $region29: #{tpu_custom_call.1} parent=27 // pred_check
          %p185 = pneg %p57
        $region30: #{tpu_custom_call.1} parent=27 // pred_check_branch
          %187 = sbr.rel (%p185) target = $region32
        $region31: #{tpu_custom_call.1} parent=27 // pred_region
          %188 = dma.done %s181, 128
        $region32: #{tpu_custom_call.1} parent=27 // pred_fallthru
          _
        %s189 = sand.u32 %s72, 1
        %s190 = scalar_lea.sflag [#allocation6], %s189
        %s191 = sand.u32 %s72, 1
        %s192 = smul.addr %s191, 2
        %s193 = scalar_lea.vmem [#allocation5], %s192
        // Predicated region
        $region33: #{tpu_custom_call.1} parent=27 // pred_check
          %p194 = pneg %p85
        $region34: #{tpu_custom_call.1} parent=27 // pred_check_branch
          %196 = sbr.rel (%p194) target = $region36
        $region35: #{tpu_custom_call.1} parent=27 // pred_region
          %197 = dma.done %s190, 32
        $region36: #{tpu_custom_call.1} parent=27 // pred_fallthru
          _
        %s198 = sand.u32 %s44, 1
        %s199 = scalar_lea.sflag [#allocation3], %s198
        %s200 = sand.u32 %s44, 1
        %s201 = smul.addr %s200, 8
        %s202 = scalar_lea.vmem [#allocation2], %s201
        %p203 = pneg %p57
        %p204 = pneg %p54
        %s205 = sand.u32 %s72, 1
        %s206 = scalar_lea.sflag [#allocation6], %s205
        %s207 = sand.u32 %s72, 1
        %s208 = smul.addr %s207, 2
        %s209 = scalar_lea.vmem [#allocation5], %s208
        %p210 = pneg %p85
        %p211 = pneg %p82
        %p212 = pneg %p113
        %p213 = pneg %p110
        %s214 = sand.u32 %s100, 1
        %s215 = scalar_lea.sflag [#allocation4], %s214
        %s216 = sand.u32 %s100, 1
        %s217 = smul.addr %s216, 8
        %s218 = scalar_lea.vmem [#allocation7], %s217
        %v219 = vld [vmem:[%s193] sm:$0x3]
        %vm220 = vcmp.ne.s32.totalorder %v219, 0
        %v221 = vld [vmem:[%s184] sm:$0x3]
        %s222 = scalar_lea.vmem %s184, 2 [#allocation2]
        %v223 = vld [vmem:[%s222] sm:$0x3]
        %s224 = scalar_lea.vmem %s184, 4 [#allocation2]
        %v225 = vld [vmem:[%s224] sm:$0x3]
        %v226 = vmax.f32 %v223, %v225
        %s227 = scalar_lea.vmem %s184, 6 [#allocation2]
        %v228 = vld [vmem:[%s227] sm:$0x3]
        %v229 = vmax.f32 %v226, %v228
        %vm230 = vcmp.gt.f32.partialorder %v229, %v221
        %vm231 = vmand %vm230, %vm220
        %v232 = vsel %vm231, 1, 0
        %vm233 = vcmask 1041408
        %v234 = vsel %vm233, %v232, 0
        %v235 = vand.u32 %v234, 65535
        %v236 = vshrl.u32 %v234, 16
        %v237 = vcvt.s32.f32 %v235
        %v238 = vcvt.s32.f32 %v236
        %239 = vadd.xlane.f32.xlu0 %v237
        %v240 = vpop.xlane.xlu0 %239
        %241 = vadd.xlane.f32.xlu0 %v238
        %v242 = vpop.xlane.xlu0 %241
        %v243 = vcvt.f32.s32 %v240
        %v244 = vcvt.f32.s32 %v242
        %v245 = vshll.u32 %v244, 16
        %v246 = vadd.s32 %v245, %v243
        %v247 = vrot.slane %v246, 4
        %v248 = vadd.s32 %v246, %v247
        %v249 = vrot.slane %v248, 2
        %v250 = vadd.s32 %v248, %v249
        %v251 = vrot.slane %v250, 1
        %v252 = vadd.s32 %v250, %v251
        %s253 = vtos %v252
        %v254 = vsel %vm230, 1, 0
        %v255 = vsel %vm233, %v254, 0
        %v256 = vand.u32 %v255, 65535
        %v257 = vshrl.u32 %v255, 16
        %v258 = vcvt.s32.f32 %v256
        %v259 = vcvt.s32.f32 %v257
        %260 = vadd.xlane.f32.xlu0 %v258
        %v261 = vpop.xlane.xlu0 %260
        %262 = vadd.xlane.f32.xlu0 %v259
        %v263 = vpop.xlane.xlu0 %262
        %v264 = vcvt.f32.s32 %v261
        %v265 = vcvt.f32.s32 %v263
        %v266 = vshll.u32 %v265, 16
        %v267 = vadd.s32 %v266, %v264
        %v268 = vrot.slane %v267, 4
        %v269 = vadd.s32 %v267, %v268
        %v270 = vrot.slane %v269, 2
        %v271 = vadd.s32 %v269, %v270
        %v272 = vrot.slane %v271, 1
        %v273 = vadd.s32 %v271, %v272
        %s274 = vtos %v273
        %s275 = ssub.s32 %s274, %s253
        %v276 = vsel %vm220, 1, 0
        %v277 = vsel %vm233, %v276, 0
        %v278 = vand.u32 %v277, 65535
        %v279 = vshrl.u32 %v277, 16
        %v280 = vcvt.s32.f32 %v278
        %v281 = vcvt.s32.f32 %v279
        %282 = vadd.xlane.f32.xlu0 %v280
        %v283 = vpop.xlane.xlu0 %282
        %284 = vadd.xlane.f32.xlu0 %v281
        %v285 = vpop.xlane.xlu0 %284
        %v286 = vcvt.f32.s32 %v283
        %v287 = vcvt.f32.s32 %v285
        %v288 = vshll.u32 %v287, 16
        %v289 = vadd.s32 %v288, %v286
        %v290 = vrot.slane %v289, 4
        %v291 = vadd.s32 %v289, %v290
        %v292 = vrot.slane %v291, 2
        %v293 = vadd.s32 %v291, %v292
        %v294 = vrot.slane %v293, 1
        %v295 = vadd.s32 %v293, %v294
        %s296 = vtos %v295
        %s297 = ssub.s32 %s296, %s253
        %v298 = vlaneseq
        %v299 = vshrl.u32 %v298, 7
        %vm300 = vcmp.eq.s32.totalorder %v299, 0
        %vm301 = vcmp.eq.s32.totalorder %v299, 1
        %vm302 = vcmp.eq.s32.totalorder %v299, 2
        %v303 = vstv %s253
        %v304 = vsel %vm302, %v303, 0
        %v305 = vstv %s297
        %v306 = vsel %vm301, %v305, %v304
        %v307 = vstv %s275
        %v308 = vsel %vm300, %v307, %v306
        %309 = vst [vmem:[%s218] sm:$0xff] %v308
        %s310 = sand.u32 %s100, 1
        %s311 = scalar_lea.sflag [#allocation4], %s310
        %s312 = sand.u32 %s100, 1
        %s313 = smul.addr %s312, 8
        %s314 = scalar_lea.vmem [#allocation7], %s313
        // Predicated region
        $region37: #{tpu_custom_call.1} parent=27 // pred_check
          %p315 = pneg %p110
        $region38: #{tpu_custom_call.1} parent=27 // pred_check_branch
          %317 = sbr.rel (%p315) target = $region40
        $region39: #{tpu_custom_call.1} parent=27 // pred_region
          %s319 = ssub.s32 128, 128
          %320 = vsyncadd %s311, %s319
          %s321 = sadd.s32 %s27, %s26
          %s322 = smul.addr %s321, 128
          %s323 = scalar_lea.hbm %s2, %s322
          %s325 = sshll.u32 %s314, 4
          %s326 = int_to_ptr.vmem [resolvable:$true] %s325
          %328 = dma.vmem_to_hbm [thread:$0]  %s326, 128, %s323, %s311
        $region40: #{tpu_custom_call.1} parent=27 // pred_fallthru
          _
      $region28: #{tpu_custom_call.1} parent=5 // pred_fallthru
        _
      %p329 = scmp.le.s32.totalorder 2, %s17
      // Predicated region
      $region41: #{tpu_custom_call.1} parent=5 // pred_check
        %p330 = pneg %p329
      $region42: #{tpu_custom_call.1} parent=5 // pred_check_branch
        %332 = sbr.rel (%p330) target = $region44
      $region43: #{tpu_custom_call.1} parent=5 // pred_region
        %s333 = ssub.s32 %s17, 2
        // Predicated region
        $region45: #{tpu_custom_call.1} parent=43 // pred_check
          %p334 = pneg %p116
        $region46: #{tpu_custom_call.1} parent=43 // pred_check_branch
          %336 = sbr.rel (%p334) target = $region48
        $region47: #{tpu_custom_call.1} parent=43 // pred_region
          %s337 = sand.u32 %s101, 1
          %s338 = scalar_lea.sflag [#allocation4], %s337
          %s339 = sand.u32 %s101, 1
          %s340 = smul.addr %s339, 8
          %s341 = scalar_lea.vmem [#allocation7], %s340
          %342 = dma.done %s338, 128
        $region48: #{tpu_custom_call.1} parent=43 // pred_fallthru
          _
      $region44: #{tpu_custom_call.1} parent=5 // pred_fallthru
        _
    $region6: #{tpu_custom_call.1} parent=1 // loop_footer
      %s21 = sadd.s32 1, %s17
    $region7: #{tpu_custom_call.1} parent=1 // loop_footer_branch
      %16 = sbr.rel target = $region3
    $region8: #{tpu_custom_call.1} parent=1 // loop_exit
      _
    %343 = vsyncpa [#allocation3], 1
    %s344 = scalar_lea.sflag [#allocation3], 1
    %345 = vsyncpa %s344, 1
    %346 = vsyncpa [#allocation6], 1
    %s347 = scalar_lea.sflag [#allocation6], 1
    %348 = vsyncpa %s347, 1
    %349 = vsyncpa [#allocation4], 1
    %s350 = scalar_lea.sflag [#allocation4], 1
    %351 = vsyncpa %s350, 1

</llo_original>
